<compile_context>
chip_gen: v6e
topology: v6e:2x2x1
jax: 0.10.0
libtpu: 0.0.40
codegen_flags: <defaults>
</compile_context>

<pallas_src>
import functools

import jax
import jax.numpy as jnp
from jax.experimental import pallas as pl
from jax.experimental.pallas import tpu as pltpu


def _fsmn_kernel(x_ref, w_ref, o_ref, *, l_order, r_order, l_stride, r_stride,
                 chunk, kernel_res):
    # x_ref: (1, T, d)   input block (full T, feature tile)
    # w_ref: (n_taps, d) per-channel filter taps
    # o_ref: (1, T, d)   output block
    T = x_ref.shape[1]
    d = x_ref.shape[2]
    out_dtype = o_ref.dtype

    # Hoist the filter: single load + f32 cast; fold the residual (+1) into the
    # center tap so the residual add costs nothing extra.
    w = w_ref[...].astype(jnp.float32)                     # (n_taps, d)
    center = w[l_order:l_order + 1, :]                     # (1, d)
    if kernel_res:
        center = center + 1.0

    # (static time shift, (1, d) weight row) for every non-center tap.
    #   left tap k  multiplies x[t - (l_order - k) * l_stride]
    #   right tap j multiplies x[t + 1 + j * r_stride]
    taps = []
    for k in range(l_order):
        taps.append((-(l_order - k) * l_stride, w[k:k + 1, :]))
    for j in range(r_order):
        taps.append((1 + j * r_stride, w[l_order + 1 + j:l_order + 2 + j, :]))

    clen = min(chunk, T)
    # Row-index map for halo masks at the sequence boundaries (hoisted: JAX
    # does not CSE broadcast/iota, so build it exactly once).
    rows = jax.lax.broadcasted_iota(jnp.int32, (clen, d), 0)

    # Chunk starts covering [0, T); the last chunk is clamped so every chunk is
    # exactly `clen` rows (a small overlap beats an unaligned tail).
    starts = list(range(0, max(T - clen, 0) + 1, clen))
    if starts[-1] != T - clen:
        starts.append(T - clen)

    for cs in starts:
        # Center tap (residual folded in) is always fully in bounds.
        acc = x_ref[0, pl.ds(cs, clen), :].astype(jnp.float32) * center
        for s, wrow in taps:
            ds = cs + s                        # first source row this tap wants
            lo_cut = max(0, -ds)               # leading rows reading the zero halo
            hi_cut = max(0, ds + clen - T)     # trailing rows reading the zero halo
            if lo_cut + hi_cut >= clen:
                continue                       # tap sees only halo in this chunk
            if lo_cut == 0 and hi_cut == 0:
                # Bulk case: one shifted slice straight from the input block.
                xa = x_ref[0, pl.ds(ds, clen), :].astype(jnp.float32)
            else:
                # Edge chunk: load an in-bounds window, realign with an XLU
                # roll, and zero the rows that fall in the sequence halo.
                src = min(max(ds, 0), T - clen)
                xa = x_ref[0, pl.ds(src, clen), :].astype(jnp.float32)
                shift = (src - ds) % clen
                if shift:
                    xa = pltpu.roll(xa, shift=shift, axis=0)
                valid = (rows >= lo_cut) & (rows < clen - hi_cut)
                xa = jnp.where(valid, xa, 0.0)
            acc = acc + xa * wrow
        o_ref[0, pl.ds(cs, clen), :] = acc.astype(out_dtype)


def _round_up(x, m):
    return ((x + m - 1) // m) * m


def fsmn_forward(inputs, filt, *, l_order, r_order, l_stride=1, r_stride=1,
                 kernel_res=False):
    """inputs: (B, T, D), filt: (l_order + r_order + 1, D) -> (B, T, D)."""
    B, T, D = inputs.shape
    n_taps = filt.shape[0]
    assert n_taps == l_order + r_order + 1
    assert filt.shape[1] == D

    LANES, SUBLANES = 128, 8
    itemsize = jnp.dtype(inputs.dtype).itemsize

    # Feature tiling: lane-dense 128-multiples when D allows it; otherwise a
    # single full-D block (block dim == full array dim is always legal), so we
    # never pay host-side pad/slice passes over the whole (B, T, D) tensor.
    if D % LANES == 0:
        # Double-buffered input + output blocks must fit comfortably in VMEM.
        budget = 24 * 1024 * 1024
        per_lane = 4 * T * itemsize            # 2 bufs x (in + out) per feature lane
        max_dtile = max(LANES, (budget // per_lane) // LANES * LANES)
        max_dtile = min(max_dtile, D)
        d_tile = LANES
        for cand in range(max_dtile, LANES - 1, -LANES):
            if D % cand == 0:
                d_tile = cand
                break
    else:
        d_tile = D
    n_d = D // d_tile

    # In-kernel T chunk: ~64 KiB of f32 per chunk value so the accumulator and
    # per-tap slice stay vreg-resident; cap the static unroll at 64 chunks.
    chunk = max(SUBLANES, min(256, (16384 // d_tile) // SUBLANES * SUBLANES))
    if -(-T // chunk) > 64:
        chunk = _round_up(-(-T // 64), SUBLANES)

    kernel = functools.partial(
        _fsmn_kernel, l_order=l_order, r_order=r_order, l_stride=l_stride,
        r_stride=r_stride, chunk=chunk, kernel_res=kernel_res)

    return pl.pallas_call(
        kernel,
        out_shape=jax.ShapeDtypeStruct((B, T, D), inputs.dtype),
        grid_spec=pltpu.PrefetchScalarGridSpec(
            num_scalar_prefetch=0,
            grid=(B, n_d),
            in_specs=[
                pl.BlockSpec((1, T, d_tile), lambda b, d: (b, 0, d)),
                pl.BlockSpec((n_taps, d_tile), lambda b, d: (0, d)),
            ],
            out_specs=pl.BlockSpec((1, T, d_tile), lambda b, d: (b, 0, d)),
        ),
        compiler_params=pltpu.CompilerParams(
            dimension_semantics=("parallel", "parallel"),
            vmem_limit_bytes=48 * 1024 * 1024),
    )(inputs, filt)


def fsmn_reference(inputs, filt, *, l_order, r_order, l_stride=1, r_stride=1,
                   kernel_res=False):
    """Pure-JAX replica of the PyTorch forward, for correctness checking."""
    B, T, D = inputs.shape
    lpad = l_order * l_stride
    rpad = r_order * r_stride
    x = jnp.pad(inputs, ((0, 0), (lpad, rpad), (0, 0)))
    outs = []
    for frame in range(lpad, T + lpad):
        l_frame = jnp.sum(
            x[:, frame - lpad:frame:l_stride] * filt[:l_order],
            axis=1, keepdims=True)
        c_frame = x[:, frame:frame + 1] * filt[l_order:l_order + 1]
        cur = l_frame + c_frame
        if r_order > 0:
            r_frame = jnp.sum(
                x[:, frame + 1:frame + 1 + r_order * r_stride:r_stride]
                * filt[l_order + 1:],
                axis=1, keepdims=True)
            cur = cur + r_frame
        outs.append(cur)
    out = jnp.concatenate(outs, axis=1)
    if kernel_res:
        out = out + inputs
    return out


if __name__ == "__main__":
    def _run_case(key, *, B, T, D, l_order, r_order, l_stride, r_stride,
                  kernel_res):
        kx, kf = jax.random.split(key)
        x = jax.random.normal(kx, (B, T, D), dtype=jnp.float32)
        # nn.Parameter(torch.randn(l_order + r_order + 1, dims))
        filt = jax.random.normal(kf, (l_order + r_order + 1, D),
                                 dtype=jnp.float32)
        out = fsmn_forward(x, filt, l_order=l_order, r_order=r_order,
                           l_stride=l_stride, r_stride=r_stride,
                           kernel_res=kernel_res)
        out = jax.block_until_ready(out)
        ref = fsmn_reference(x, filt, l_order=l_order, r_order=r_order,
                             l_stride=l_stride, r_stride=r_stride,
                             kernel_res=kernel_res)
        assert out.shape == (B, T, D)
        assert jnp.allclose(out, ref, atol=1e-5, rtol=1e-5), \
            "mismatch vs reference"

    root = jax.random.PRNGKey(0)
    k1, k2 = jax.random.split(root)
    # Lane-dense tiled-D path (D % 128 == 0): strided left context + residual.
    _run_case(k1, B=2, T=16, D=256, l_order=3, r_order=2,
              l_stride=2, r_stride=1, kernel_res=True)
    # Full-D fallback path (D % 128 != 0): no residual, strided right context.
    _run_case(k2, B=2, T=16, D=40, l_order=2, r_order=1,
              l_stride=1, r_stride=2, kernel_res=False)
    print("KERNEL_OK")
</pallas_src>

<mosaic_0001>
module attributes {stable_mosaic.version = 11 : i64} {
  func.func @_fsmn_kernel(%arg0: i32, %arg1: i32, %arg2: memref<1x16x256xf32, #tpu.memory_space<vmem>>, %arg3: memref<6x256xf32, #tpu.memory_space<vmem>>, %arg4: memref<1x16x256xf32, #tpu.memory_space<vmem>>) attributes {dimension_semantics = [#tpu.dimension_semantics<parallel>, #tpu.dimension_semantics<parallel>], iteration_bounds = array<i64: 2, 1>, scalar_prefetch = 0 : i64, scratch_operands = 0 : i64, tpu.core_type = #tpu.core_type<tc>, window_params = [{transform_indices = @transform_0, window_bounds = array<i64: 1, 16, 256>}, {transform_indices = @transform_1, window_bounds = array<i64: 6, 256>}, {transform_indices = @transform_2, window_bounds = array<i64: 1, 16, 256>}]} {
    %c0 = arith.constant 0 : index
    %c0_0 = arith.constant 0 : index
    %0 = vector.load %arg3[%c0, %c0_0] : memref<6x256xf32, #tpu.memory_space<vmem>>, vector<6x256xf32>
    %1 = vector.extract_strided_slice %0 {offsets = [3, 0], sizes = [1, 256], strides = [1, 1]} : vector<6x256xf32> to vector<1x256xf32>
    %cst = arith.constant 1.000000e+00 : f32
    %2 = vector.broadcast %cst : f32 to vector<1x256xf32>
    %3 = arith.addf %1, %2 : vector<1x256xf32>
    %4 = vector.extract_strided_slice %0 {offsets = [0, 0], sizes = [1, 256], strides = [1, 1]} : vector<6x256xf32> to vector<1x256xf32>
    %5 = vector.extract_strided_slice %0 {offsets = [1, 0], sizes = [1, 256], strides = [1, 1]} : vector<6x256xf32> to vector<1x256xf32>
    %6 = vector.extract_strided_slice %0 {offsets = [2, 0], sizes = [1, 256], strides = [1, 1]} : vector<6x256xf32> to vector<1x256xf32>
    %7 = vector.extract_strided_slice %0 {offsets = [4, 0], sizes = [1, 256], strides = [1, 1]} : vector<6x256xf32> to vector<1x256xf32>
    %8 = vector.extract_strided_slice %0 {offsets = [5, 0], sizes = [1, 256], strides = [1, 1]} : vector<6x256xf32> to vector<1x256xf32>
    %9 = tpu.iota {dimensions = array<i32: 0>} : vector<16x256xi32>
    %c0_1 = arith.constant 0 : index
    %c0_2 = arith.constant 0 : index
    %c0_3 = arith.constant 0 : index
    %10 = vector.load %arg2[%c0_1, %c0_2, %c0_3] : memref<1x16x256xf32, #tpu.memory_space<vmem>>, vector<1x16x256xf32>
    %11 = vector.shape_cast %10 : vector<1x16x256xf32> to vector<16x256xf32>
    %12 = vector.broadcast %3 : vector<1x256xf32> to vector<16x256xf32>
    %13 = arith.mulf %11, %12 : vector<16x256xf32>
    %c0_4 = arith.constant 0 : index
    %c0_5 = arith.constant 0 : index
    %c0_6 = arith.constant 0 : index
    %14 = vector.load %arg2[%c0_4, %c0_5, %c0_6] : memref<1x16x256xf32, #tpu.memory_space<vmem>>, vector<1x16x256xf32>
    %15 = vector.shape_cast %14 : vector<1x16x256xf32> to vector<16x256xf32>
    %c6_i32 = arith.constant 6 : i32
    %16 = tpu.dynamic_rotate %15 by %c6_i32 dim 0 : vector<16x256xf32>, i32 -> vector<16x256xf32>
    %c6_i32_7 = arith.constant 6 : i32
    %17 = vector.broadcast %c6_i32_7 : i32 to vector<16x256xi32>
    %18 = arith.cmpi sge, %9, %17 : vector<16x256xi32>
    %c16_i32 = arith.constant 16 : i32
    %19 = vector.broadcast %c16_i32 : i32 to vector<16x256xi32>
    %20 = arith.cmpi slt, %9, %19 : vector<16x256xi32>
    %21 = arith.andi %18, %20 : vector<16x256xi1>
    %cst_8 = arith.constant 0.000000e+00 : f32
    %22 = vector.broadcast %cst_8 : f32 to vector<16x256xf32>
    %23 = arith.select %21, %16, %22 : vector<16x256xi1>, vector<16x256xf32>
    %24 = vector.broadcast %4 : vector<1x256xf32> to vector<16x256xf32>
    %25 = arith.mulf %23, %24 : vector<16x256xf32>
    %26 = arith.addf %13, %25 : vector<16x256xf32>
    %c0_9 = arith.constant 0 : index
    %c0_10 = arith.constant 0 : index
    %c0_11 = arith.constant 0 : index
    %27 = vector.load %arg2[%c0_9, %c0_10, %c0_11] : memref<1x16x256xf32, #tpu.memory_space<vmem>>, vector<1x16x256xf32>
    %28 = vector.shape_cast %27 : vector<1x16x256xf32> to vector<16x256xf32>
    %c4_i32 = arith.constant 4 : i32
    %29 = tpu.dynamic_rotate %28 by %c4_i32 dim 0 : vector<16x256xf32>, i32 -> vector<16x256xf32>
    %c4_i32_12 = arith.constant 4 : i32
    %30 = vector.broadcast %c4_i32_12 : i32 to vector<16x256xi32>
    %31 = arith.cmpi sge, %9, %30 : vector<16x256xi32>
    %c16_i32_13 = arith.constant 16 : i32
    %32 = vector.broadcast %c16_i32_13 : i32 to vector<16x256xi32>
    %33 = arith.cmpi slt, %9, %32 : vector<16x256xi32>
    %34 = arith.andi %31, %33 : vector<16x256xi1>
    %cst_14 = arith.constant 0.000000e+00 : f32
    %35 = vector.broadcast %cst_14 : f32 to vector<16x256xf32>
    %36 = arith.select %34, %29, %35 : vector<16x256xi1>, vector<16x256xf32>
    %37 = vector.broadcast %5 : vector<1x256xf32> to vector<16x256xf32>
    %38 = arith.mulf %36, %37 : vector<16x256xf32>
    %39 = arith.addf %26, %38 : vector<16x256xf32>
    %c0_15 = arith.constant 0 : index
    %c0_16 = arith.constant 0 : index
    %c0_17 = arith.constant 0 : index
    %40 = vector.load %arg2[%c0_15, %c0_16, %c0_17] : memref<1x16x256xf32, #tpu.memory_space<vmem>>, vector<1x16x256xf32>
    %41 = vector.shape_cast %40 : vector<1x16x256xf32> to vector<16x256xf32>
    %c2_i32 = arith.constant 2 : i32
    %42 = tpu.dynamic_rotate %41 by %c2_i32 dim 0 : vector<16x256xf32>, i32 -> vector<16x256xf32>
    %c2_i32_18 = arith.constant 2 : i32
    %43 = vector.broadcast %c2_i32_18 : i32 to vector<16x256xi32>
    %44 = arith.cmpi sge, %9, %43 : vector<16x256xi32>
    %c16_i32_19 = arith.constant 16 : i32
    %45 = vector.broadcast %c16_i32_19 : i32 to vector<16x256xi32>
    %46 = arith.cmpi slt, %9, %45 : vector<16x256xi32>
    %47 = arith.andi %44, %46 : vector<16x256xi1>
    %cst_20 = arith.constant 0.000000e+00 : f32
    %48 = vector.broadcast %cst_20 : f32 to vector<16x256xf32>
    %49 = arith.select %47, %42, %48 : vector<16x256xi1>, vector<16x256xf32>
    %50 = vector.broadcast %6 : vector<1x256xf32> to vector<16x256xf32>
    %51 = arith.mulf %49, %50 : vector<16x256xf32>
    %52 = arith.addf %39, %51 : vector<16x256xf32>
    %c0_21 = arith.constant 0 : index
    %c0_22 = arith.constant 0 : index
    %c0_23 = arith.constant 0 : index
    %53 = vector.load %arg2[%c0_21, %c0_22, %c0_23] : memref<1x16x256xf32, #tpu.memory_space<vmem>>, vector<1x16x256xf32>
    %54 = vector.shape_cast %53 : vector<1x16x256xf32> to vector<16x256xf32>
    %c15_i32 = arith.constant 15 : i32
    %55 = tpu.dynamic_rotate %54 by %c15_i32 dim 0 : vector<16x256xf32>, i32 -> vector<16x256xf32>
    %c0_i32 = arith.constant 0 : i32
    %56 = vector.broadcast %c0_i32 : i32 to vector<16x256xi32>
    %57 = arith.cmpi sge, %9, %56 : vector<16x256xi32>
    %c15_i32_24 = arith.constant 15 : i32
    %58 = vector.broadcast %c15_i32_24 : i32 to vector<16x256xi32>
    %59 = arith.cmpi slt, %9, %58 : vector<16x256xi32>
    %60 = arith.andi %57, %59 : vector<16x256xi1>
    %cst_25 = arith.constant 0.000000e+00 : f32
    %61 = vector.broadcast %cst_25 : f32 to vector<16x256xf32>
    %62 = arith.select %60, %55, %61 : vector<16x256xi1>, vector<16x256xf32>
    %63 = vector.broadcast %7 : vector<1x256xf32> to vector<16x256xf32>
    %64 = arith.mulf %62, %63 : vector<16x256xf32>
    %65 = arith.addf %52, %64 : vector<16x256xf32>
    %c0_26 = arith.constant 0 : index
    %c0_27 = arith.constant 0 : index
    %c0_28 = arith.constant 0 : index
    %66 = vector.load %arg2[%c0_26, %c0_27, %c0_28] : memref<1x16x256xf32, #tpu.memory_space<vmem>>, vector<1x16x256xf32>
    %67 = vector.shape_cast %66 : vector<1x16x256xf32> to vector<16x256xf32>
    %c14_i32 = arith.constant 14 : i32
    %68 = tpu.dynamic_rotate %67 by %c14_i32 dim 0 : vector<16x256xf32>, i32 -> vector<16x256xf32>
    %c0_i32_29 = arith.constant 0 : i32
    %69 = vector.broadcast %c0_i32_29 : i32 to vector<16x256xi32>
    %70 = arith.cmpi sge, %9, %69 : vector<16x256xi32>
    %c14_i32_30 = arith.constant 14 : i32
    %71 = vector.broadcast %c14_i32_30 : i32 to vector<16x256xi32>
    %72 = arith.cmpi slt, %9, %71 : vector<16x256xi32>
    %73 = arith.andi %70, %72 : vector<16x256xi1>
    %cst_31 = arith.constant 0.000000e+00 : f32
    %74 = vector.broadcast %cst_31 : f32 to vector<16x256xf32>
    %75 = arith.select %73, %68, %74 : vector<16x256xi1>, vector<16x256xf32>
    %76 = vector.broadcast %8 : vector<1x256xf32> to vector<16x256xf32>
    %77 = arith.mulf %75, %76 : vector<16x256xf32>
    %78 = arith.addf %65, %77 : vector<16x256xf32>
    %c0_32 = arith.constant 0 : index
    %c0_33 = arith.constant 0 : index
    %c0_34 = arith.constant 0 : index
    %79 = vector.load %arg4[%c0_32, %c0_33, %c0_34] : memref<1x16x256xf32, #tpu.memory_space<vmem>>, vector<1x16x256xf32>
    %80 = vector.shape_cast %79 : vector<1x16x256xf32> to vector<16x256xf32>
    %81 = vector.shape_cast %78 : vector<16x256xf32> to vector<1x16x256xf32>
    tpu.vector_store %arg4[%c0_32, %c0_33, %c0_34], %81 {strides = array<i32>} : memref<1x16x256xf32, #tpu.memory_space<vmem>>, vector<1x16x256xf32>,
    return
  }
  func.func @transform_0(%arg0: i32, %arg1: i32) -> (i32, i32, i32) {
    %c0_i32 = arith.constant 0 : i32
    %c0_i32_0 = arith.constant 0 : i32
    return %arg0, %c0_i32, %arg1 : i32, i32, i32
  }
  func.func @transform_1(%arg0: i32, %arg1: i32) -> (i32, i32) {
    %c0_i32 = arith.constant 0 : i32
    %c0_i32_0 = arith.constant 0 : i32
    return %c0_i32, %arg1 : i32, i32
  }
  func.func @transform_2(%arg0: i32, %arg1: i32) -> (i32, i32, i32) {
    %c0_i32 = arith.constant 0 : i32
    %c0_i32_0 = arith.constant 0 : i32
    return %arg0, %c0_i32, %arg1 : i32, i32, i32
  }
}

</mosaic_0001>

<llo_original>
// kernel: tpu_custom_call.1
$region0: #{tpu_custom_call.1}
  #allocation0 [shape = 'u32[]', space=smem, size = 0x4, offset = 0x4, fixed_abs, tag = 'smem constant byte address 0x4 - core index']
  #allocation1 [shape = 'u32[144,128]{1,0:T(1,128)}', space=vmem, size = 0x12000, scoped, tag = 'internal scratch']
  %s0 = inlined_call_operand.hbm [shape: f32[2,16,256], index: 0, kind: input, shape index: {}]
  %s1 = inlined_call_operand.hbm [shape: f32[6,256], index: 1, kind: input, shape index: {}]
  %s2 = inlined_call_operand.hbm [shape: f32[2,16,256], index: 2, kind: output, shape index: {}]
  %s3 = sld [smem:[#allocation0]]
  $region49: #{tpu_custom_call.1} parent=0
    _
  %s5 = ssub.s32 1, %s3
  %s6 = scalar_select 0, %s5, %s3
  $region1: #{tpu_custom_call.1} parent=0
    #allocation2 [shape = 'u8[32768]{0}', space=vmem, size = 0x8000, scoped, tag = 'input window, operand 0']
    #allocation3 [shape = 's32[2]{0}', space=sflag, size = 0x8, scoped, tag = 'scoped memory for tpu_custom_call.1']
    #allocation4 [shape = 's32[2]{0}', space=sflag, size = 0x8, scoped, tag = 'scoped memory for tpu_custom_call.1']
    #allocation5 [shape = 'u8[8192]{0}', space=vmem, size = 0x2000, scoped, tag = 'input window, operand 1, single buffered']
    #allocation6 [shape = 's32[1]{0}', space=sflag, size = 0x4, scoped, tag = 'scoped memory for tpu_custom_call.1']
    #allocation7 [shape = 'u8[32768]{0}', space=vmem, size = 0x8000, scoped, tag = 'output window, operand 0']
    %7 = vsyncpa [#allocation3], 0
    %s8 = scalar_lea.sflag [#allocation3], 1
    %9 = vsyncpa %s8, 0
    %10 = vsyncpa [#allocation6], 0
    %11 = vsyncpa [#allocation4], 0
    %s12 = scalar_lea.sflag [#allocation4], 1
    %13 = vsyncpa %s12, 0
    loop: start=0, step=1, limit=4
    $region2: #{tpu_custom_call.1} parent=1 // loop_pre_header
      _
    $region3: #{tpu_custom_call.1} parent=1 // loop_header
      %s15 = sphi 0, %s19
      %p16 = scmp.ge.s32.totalorder %s15, 4
      %s22 = sphi 0, %s34
      %s23 = sphi 0, %s30
      %s24 = sphi 0, %s22
      %s25 = sphi 0, %s23
      %s26 = sphi 0, %s24
      %s27 = sphi 0, %s25
      %s39 = sphi 0, %s41
      %s42 = sphi 0, %s39
      %s43 = sphi 0, %s42
      %s59 = sphi 0, %s43
      %s65 = sphi 0, %s67
      %s68 = sphi 0, %s65
      %s69 = sphi 0, %s68
      %s85 = sphi 0, %s69
      %s93 = sphi 0, %s95
      %s96 = sphi 0, %s93
      %s97 = sphi 0, %s96
      %s113 = sphi 0, %s97
    $region4: #{tpu_custom_call.1} parent=1 // loop_header_branch
      %18 = sbr.rel (%p16) target = $region8
    $region5: #{tpu_custom_call.1} parent=1 // loop_body
      %s20 = ssub.s32 %s15, 1
      %s21 = ssub.s32 %s15, 2
      %s28 = sadd.s32 1, %s23
      %p29 = scmp.ge.s32.totalorder %s28, 1
      %s30 = scalar_select %p29, 0, %s28
      %s31 = sadd.s32 1, %s22
      %s32 = scalar_select %p29, %s31, %s22
      %p33 = scmp.ge.s32.totalorder %s32, 2
      %s34 = scalar_select %p33, 0, %s32
      %s35 = ssub.s32 %s22, %s34
      %s36 = ssub.s32 %s23, %s30
      %s37 = sor.u32 %s35, %s36
      %p38 = scmp.eq.s32.totalorder %s37, 0
      %s40 = sadd.s32 %s39, 1
      %s41 = scalar_select %p38, %s39, %s40
      %p44 = pneg %p38
      %p45 = scmp.eq.s32.totalorder %s15, 1
      %p46 = por %p44, %p45
      %p47 = scmp.ne.s32.totalorder %s39, %s42
      %p48 = scmp.eq.s32.totalorder %s15, 0
      %p49 = por %p47, %p48
      %p50 = scmp.ne.s32.totalorder %s39, %s42
      %p51 = scmp.eq.s32.totalorder %s20, 1
      %p52 = por %p50, %p51
      %p53 = scmp.ne.s32.totalorder %s42, %s43
      %p54 = scmp.eq.s32.totalorder %s20, 0
      %p55 = por %p53, %p54
      %p56 = scmp.ne.s32.totalorder %s42, %s43
      %p57 = scmp.eq.s32.totalorder %s21, 1
      %p58 = por %p56, %p57
      %p60 = scmp.ne.s32.totalorder %s43, %s59
      %p61 = scmp.eq.s32.totalorder %s21, 0
      %p62 = por %p60, %p61
      %s63 = ssub.s32 %s23, %s30
      %p64 = scmp.eq.s32.totalorder %s63, 0
      %s66 = sadd.s32 %s65, 1
      %s67 = scalar_select %p64, %s65, %s66
      %p70 = pneg %p64
      %p71 = scmp.eq.s32.totalorder %s15, 1
      %p72 = por %p70, %p71
      %p73 = scmp.ne.s32.totalorder %s65, %s68
      %p74 = scmp.eq.s32.totalorder %s15, 0
      %p75 = por %p73, %p74
      %p76 = scmp.ne.s32.totalorder %s65, %s68
      %p77 = scmp.eq.s32.totalorder %s20, 1
      %p78 = por %p76, %p77
      %p79 = scmp.ne.s32.totalorder %s68, %s69
      %p80 = scmp.eq.s32.totalorder %s20, 0
      %p81 = por %p79, %p80
      %p82 = scmp.ne.s32.totalorder %s68, %s69
      %p83 = scmp.eq.s32.totalorder %s21, 1
      %p84 = por %p82, %p83
      %p86 = scmp.ne.s32.totalorder %s69, %s85
      %p87 = scmp.eq.s32.totalorder %s21, 0
      %p88 = por %p86, %p87
      %s89 = ssub.s32 %s22, %s34
      %s90 = ssub.s32 %s23, %s30
      %s91 = sor.u32 %s89, %s90
      %p92 = scmp.eq.s32.totalorder %s91, 0
      %s94 = sadd.s32 %s93, 1
      %s95 = scalar_select %p92, %s93, %s94
      %p98 = pneg %p92
      %p99 = scmp.eq.s32.totalorder %s15, 1
      %p100 = por %p98, %p99
      %p101 = scmp.ne.s32.totalorder %s93, %s96
      %p102 = scmp.eq.s32.totalorder %s15, 0
      %p103 = por %p101, %p102
      %p104 = scmp.ne.s32.totalorder %s93, %s96
      %p105 = scmp.eq.s32.totalorder %s20, 1
      %p106 = por %p104, %p105
      %p107 = scmp.ne.s32.totalorder %s96, %s97
      %p108 = scmp.eq.s32.totalorder %s20, 0
      %p109 = por %p107, %p108
      %p110 = scmp.ne.s32.totalorder %s96, %s97
      %p111 = scmp.eq.s32.totalorder %s21, 1
      %p112 = por %p110, %p111
      %p114 = scmp.ne.s32.totalorder %s97, %s113
      %p115 = scmp.eq.s32.totalorder %s21, 0
      %p116 = por %p114, %p115
      %p117 = scmp.le.s32.totalorder 1, %s15
      %p118 = scmp.lt.s32.totalorder %s15, 3
      %p119 = pnand %p117, %p118
      %p120 = pneg %p119
      // Predicated region
      $region9: #{tpu_custom_call.1} parent=5 // pred_check
        _
      $region10: #{tpu_custom_call.1} parent=5 // pred_check_branch
        %122 = sbr.rel (%p119) target = $region12
      $region11: #{tpu_custom_call.1} parent=5 // pred_region
        %s123 = ssub.s32 %s15, 1
        // Predicated region
        $region13: #{tpu_custom_call.1} parent=11 // pred_check
          %p124 = pneg %p81
        $region14: #{tpu_custom_call.1} parent=11 // pred_check_branch
          %126 = sbr.rel (%p124) target = $region16
        $region15: #{tpu_custom_call.1} parent=11 // pred_region
          %s127 = smul.u32 2, %s25
          %s129 = ssub.s32 256, 256
          %130 = vsyncadd [#allocation6], %s129
          %s131 = smul.addr %s127, 128
          %s132 = scalar_lea.hbm %s1, %s131
          %s134 = sshll.u32 [#allocation5], 4
          %s135 = int_to_ptr.vmem [resolvable:$true] %s134
          %137 = dma.hbm_to_vmem [thread:$0]  %s132, 256, %s135, [#allocation6]
        $region16: #{tpu_custom_call.1} parent=11 // pred_fallthru
          _
      $region12: #{tpu_custom_call.1} parent=5 // pred_fallthru
        _
      %p138 = scmp.lt.s32.totalorder %s15, 2
      // Predicated region
      $region17: #{tpu_custom_call.1} parent=5 // pred_check
        %p139 = pneg %p138
      $region18: #{tpu_custom_call.1} parent=5 // pred_check_branch
        %141 = sbr.rel (%p139) target = $region20
      $region19: #{tpu_custom_call.1} parent=5 // pred_region
        // Predicated region
        $region21: #{tpu_custom_call.1} parent=19 // pred_check
          %p142 = pneg %p49
        $region22: #{tpu_custom_call.1} parent=19 // pred_check_branch
          %144 = sbr.rel (%p142) target = $region24
        $region23: #{tpu_custom_call.1} parent=19 // pred_region
          %s145 = sand.u32 %s39, 1
          %s146 = scalar_lea.sflag [#allocation3], %s145
          %s147 = sand.u32 %s39, 1
          %s148 = smul.addr %s147, 32
          %s149 = scalar_lea.vmem [#allocation2], %s148
          %s150 = smul.u32 2, %s23
          %s152 = ssub.s32 512, 512
          %153 = vsyncadd %s146, %s152
          %s154 = smul.addr %s22, 4
          %s155 = sadd.s32 %s150, %s154
          %s156 = smul.addr %s155, 128
          %s157 = scalar_lea.hbm %s0, %s156
          %s158 = sshll.u32 %s149, 4
          %s159 = int_to_ptr.vmem [resolvable:$true] %s158
          %164 = dma.hbm_to_vmem [thread:$0]  %s157, 512, %s159, %s146, 256, 256, 16
        $region24: #{tpu_custom_call.1} parent=19 // pred_fallthru
          _
      $region20: #{tpu_custom_call.1} parent=5 // pred_fallthru
        _
      %p165 = scmp.le.s32.totalorder 1, %s15
      %p166 = scmp.lt.s32.totalorder %s15, 3
      %p167 = pnand %p165, %p166
      %p168 = pneg %p167
      // Predicated region
      $region25: #{tpu_custom_call.1} parent=5 // pred_check
        _
      $region26: #{tpu_custom_call.1} parent=5 // pred_check_branch
        %170 = sbr.rel (%p167) target = $region28
      $region27: #{tpu_custom_call.1} parent=5 // pred_region
        %s171 = ssub.s32 %s15, 1
        %s172 = sand.u32 %s42, 1
        %s173 = scalar_lea.sflag [#allocation3], %s172
        %s174 = sand.u32 %s42, 1
        %s175 = smul.addr %s174, 32
        %s176 = scalar_lea.vmem [#allocation2], %s175
        // Predicated region
        $region29: #{tpu_custom_call.1} parent=27 // pred_check
          %p177 = pneg %p55
        $region30: #{tpu_custom_call.1} parent=27 // pred_check_branch
          %179 = sbr.rel (%p177) target = $region32
        $region31: #{tpu_custom_call.1} parent=27 // pred_region
          %180 = dma.done %s173, 512
        $region32: #{tpu_custom_call.1} parent=27 // pred_fallthru
          _
        // Predicated region
        $region33: #{tpu_custom_call.1} parent=27 // pred_check
          %p181 = pneg %p81
        $region34: #{tpu_custom_call.1} parent=27 // pred_check_branch
          %183 = sbr.rel (%p181) target = $region36
        $region35: #{tpu_custom_call.1} parent=27 // pred_region
          %184 = dma.done [#allocation6], 256
        $region36: #{tpu_custom_call.1} parent=27 // pred_fallthru
          _
        %s185 = sand.u32 %s42, 1
        %s186 = scalar_lea.sflag [#allocation3], %s185
        %s187 = sand.u32 %s42, 1
        %s188 = smul.addr %s187, 32
        %s189 = scalar_lea.vmem [#allocation2], %s188
        %p190 = pneg %p55
        %p191 = pneg %p52
        %p192 = pneg %p81
        %p193 = pneg %p78
        %p194 = pneg %p109
        %p195 = pneg %p106
        %s196 = sand.u32 %s96, 1
        %s197 = scalar_lea.sflag [#allocation4], %s196
        %s198 = sand.u32 %s96, 1
        %s199 = smul.addr %s198, 32
        %s200 = scalar_lea.vmem [#allocation7], %s199
        %s201 = smul.u32 2, %s25
        %s202 = smul.u32 2, %s25
        %s203 = smul.u32 2, %s25
        %v204 = vld [vmem:[#allocation5] sm:$0x3f]
        %v205 = vld [vmem:[#allocation5 + $0x8] sm:$0x3f]
        %v206 = vadd.f32 %v204, 1.0
        %v207 = vadd.f32 %v205, 1.0
        %v208 = vlaneseq
        %v209 = vshrl.u32 %v208, 7
        %v210 = vadd.s32 %v209, 8
        %v211 = vld [vmem:[%s176] sm:$0xff]
        %v212 = vld [vmem:[%s176 + $0x8] sm:$0xff]
        %v213 = vld [vmem:[%s176 + $0x10] sm:$0xff]
        %v214 = vld [vmem:[%s176 + $0x18] sm:$0xff]
        %v215 = vlaneseq
        %v216 = vshrl.u32 %v215, 7
        %v217 = vsub.s32 3, %v216
        %v218 = vrot.slane %v206, %v217
        %v219 = vlaneseq
        %v220 = vshrl.u32 %v219, 7
        %v221 = vsub.s32 3, %v220
        %v222 = vrot.slane %v207, %v221
        %v223 = vmul.f32 %v211, %v218
        %v224 = vmul.f32 %v212, %v222
        %v225 = vmul.f32 %v213, %v218
        %v226 = vmul.f32 %v214, %v222
        %v227 = vrot.slane %v211, 2
        %v228 = vrot.slane %v212, 2
        %v229 = vrot.slane %v213, 2
        %v230 = vrot.slane %v214, 2
        %vm231 = vcmp.lt.s32.totalorder %v209, 6
        %v232 = vsel %vm231, %v227, %v229
        %v233 = vsel %vm231, %v228, %v230
        %v234 = vsel %vm231, %v229, %v227
        %v235 = vsel %vm231, %v230, %v228
        %vm236 = vcmp.ge.s32.totalorder %v209, 6
        %vm237 = vcmp.ge.s32.totalorder %v210, 6
        %vm238 = vcmp.lt.s32.totalorder %v209, 16
        %vm239 = vcmp.lt.s32.totalorder %v210, 16
        %vm240 = vmand %vm236, %vm238
        %vm241 = vmand %vm237, %vm239
        %v242 = vsel %vm240, %v234, 0.0
        %v243 = vsel %vm240, %v235, 0.0
        %v244 = vsel %vm241, %v232, 0.0
        %v245 = vsel %vm241, %v233, 0.0
        %v246 = vlaneseq
        %v247 = vshrl.u32 %v246, 7
        %v248 = vsub.s32 0, %v247
        %v249 = vrot.slane %v204, %v248
        %v250 = vlaneseq
        %v251 = vshrl.u32 %v250, 7
        %v252 = vsub.s32 0, %v251
        %v253 = vrot.slane %v205, %v252
        %v254 = vmul.f32 %v242, %v249
        %v255 = vmul.f32 %v243, %v253
        %v256 = vmul.f32 %v244, %v249
        %v257 = vmul.f32 %v245, %v253
        %v258 = vadd.f32 %v223, %v254
        %v259 = vadd.f32 %v224, %v255
        %v260 = vadd.f32 %v225, %v256
        %v261 = vadd.f32 %v226, %v257
        %v262 = vrot.slane %v211, 4
        %v263 = vrot.slane %v212, 4
        %v264 = vrot.slane %v213, 4
        %v265 = vrot.slane %v214, 4
        %vm266 = vcmp.lt.s32.totalorder %v209, 4
        %v267 = vsel %vm266, %v262, %v264
        %v268 = vsel %vm266, %v263, %v265
        %v269 = vsel %vm266, %v264, %v262
        %v270 = vsel %vm266, %v265, %v263
        %vm271 = vcmp.ge.s32.totalorder %v209, 4
        %vm272 = vcmp.ge.s32.totalorder %v210, 4
        %vm273 = vmand %vm271, %vm238
        %vm274 = vmand %vm272, %vm239
        %v275 = vsel %vm273, %v269, 0.0
        %v276 = vsel %vm273, %v270, 0.0
        %v277 = vsel %vm274, %v267, 0.0
        %v278 = vsel %vm274, %v268, 0.0
        %v279 = vlaneseq
        %v280 = vshrl.u32 %v279, 7
        %v281 = vsub.s32 1, %v280
        %v282 = vrot.slane %v204, %v281
        %v283 = vlaneseq
        %v284 = vshrl.u32 %v283, 7
        %v285 = vsub.s32 1, %v284
        %v286 = vrot.slane %v205, %v285
        %v287 = vmul.f32 %v275, %v282
        %v288 = vmul.f32 %v276, %v286
        %v289 = vmul.f32 %v277, %v282
        %v290 = vmul.f32 %v278, %v286
        %v291 = vadd.f32 %v258, %v287
        %v292 = vadd.f32 %v259, %v288
        %v293 = vadd.f32 %v260, %v289
        %v294 = vadd.f32 %v261, %v290
        %v295 = vrot.slane %v211, 6
        %v296 = vrot.slane %v212, 6
        %v297 = vrot.slane %v213, 6
        %v298 = vrot.slane %v214, 6
        %vm299 = vcmp.lt.s32.totalorder %v209, 2
        %v300 = vsel %vm299, %v295, %v297
        %v301 = vsel %vm299, %v296, %v298
        %v302 = vsel %vm299, %v297, %v295
        %v303 = vsel %vm299, %v298, %v296
        %vm304 = vcmp.ge.s32.totalorder %v209, 2
        %vm305 = vcmp.ge.s32.totalorder %v210, 2
        %vm306 = vmand %vm304, %vm238
        %vm307 = vmand %vm305, %vm239
        %v308 = vsel %vm306, %v302, 0.0
        %v309 = vsel %vm306, %v303, 0.0
        %v310 = vsel %vm307, %v300, 0.0
        %v311 = vsel %vm307, %v301, 0.0
        %v312 = vlaneseq
        %v313 = vshrl.u32 %v312, 7
        %v314 = vsub.s32 2, %v313
        %v315 = vrot.slane %v204, %v314
        %v316 = vlaneseq
        %v317 = vshrl.u32 %v316, 7
        %v318 = vsub.s32 2, %v317
        %v319 = vrot.slane %v205, %v318
        %v320 = vmul.f32 %v308, %v315
        %v321 = vmul.f32 %v309, %v319
        %v322 = vmul.f32 %v310, %v315
        %v323 = vmul.f32 %v311, %v319
        %v324 = vadd.f32 %v291, %v320
        %v325 = vadd.f32 %v292, %v321
        %v326 = vadd.f32 %v293, %v322
        %v327 = vadd.f32 %v294, %v323
        %v328 = vrot.slane %v211, 1
        %v329 = vrot.slane %v212, 1
        %v330 = vrot.slane %v213, 1
        %v331 = vrot.slane %v214, 1
        %vm332 = vcmp.lt.s32.totalorder %v209, 7
        %v333 = vsel %vm332, %v328, %v330
        %v334 = vsel %vm332, %v329, %v331
        %v335 = vsel %vm332, %v330, %v328
        %v336 = vsel %vm332, %v331, %v329
        %vm337 = vcmp.ge.s32.totalorder %v209, 0
        %vm338 = vcmp.ge.s32.totalorder %v210, 0
        %vm339 = vcmp.lt.s32.totalorder %v209, 15
        %vm340 = vcmp.lt.s32.totalorder %v210, 15
        %vm341 = vmand %vm337, %vm339
        %vm342 = vmand %vm338, %vm340
        %v343 = vsel %vm341, %v333, 0.0
        %v344 = vsel %vm341, %v334, 0.0
        %v345 = vsel %vm342, %v335, 0.0
        %v346 = vsel %vm342, %v336, 0.0
        %v347 = vlaneseq
        %v348 = vshrl.u32 %v347, 7
        %v349 = vsub.s32 4, %v348
        %v350 = vrot.slane %v204, %v349
        %v351 = vlaneseq
        %v352 = vshrl.u32 %v351, 7
        %v353 = vsub.s32 4, %v352
        %v354 = vrot.slane %v205, %v353
        %v355 = vmul.f32 %v343, %v350
        %v356 = vmul.f32 %v344, %v354
        %v357 = vmul.f32 %v345, %v350
        %v358 = vmul.f32 %v346, %v354
        %v359 = vadd.f32 %v324, %v355
        %v360 = vadd.f32 %v325, %v356
        %v361 = vadd.f32 %v326, %v357
        %v362 = vadd.f32 %v327, %v358
        %vm363 = vcmp.lt.s32.totalorder %v209, 14
        %vm364 = vcmp.lt.s32.totalorder %v210, 14
        %vm365 = vmand %vm337, %vm363
        %vm366 = vmand %vm338, %vm364
        %v367 = vsel %vm365, %v232, 0.0
        %v368 = vsel %vm365, %v233, 0.0
        %v369 = vsel %vm366, %v234, 0.0
        %v370 = vsel %vm366, %v235, 0.0
        %v371 = vlaneseq
        %v372 = vshrl.u32 %v371, 7
        %v373 = vsub.s32 5, %v372
        %v374 = vrot.slane %v204, %v373
        %v375 = vlaneseq
        %v376 = vshrl.u32 %v375, 7
        %v377 = vsub.s32 5, %v376
        %v378 = vrot.slane %v205, %v377
        %v379 = vmul.f32 %v367, %v374
        %v380 = vmul.f32 %v368, %v378
        %v381 = vmul.f32 %v369, %v374
        %v382 = vmul.f32 %v370, %v378
        %v383 = vadd.f32 %v359, %v379
        %v384 = vadd.f32 %v360, %v380
        %v385 = vadd.f32 %v361, %v381
        %v386 = vadd.f32 %v362, %v382
        %387 = vst [vmem:[%s200] sm:$0xff] %v383
        %388 = vst [vmem:[%s200 + $0x8] sm:$0xff] %v384
        %389 = vst [vmem:[%s200 + $0x10] sm:$0xff] %v385
        %390 = vst [vmem:[%s200 + $0x18] sm:$0xff] %v386
        %s391 = sand.u32 %s96, 1
        %s392 = scalar_lea.sflag [#allocation4], %s391
        %s393 = sand.u32 %s96, 1
        %s394 = smul.addr %s393, 32
        %s395 = scalar_lea.vmem [#allocation7], %s394
        // Predicated region
        $region37: #{tpu_custom_call.1} parent=27 // pred_check
          %p396 = pneg %p106
        $region38: #{tpu_custom_call.1} parent=27 // pred_check_branch
          %398 = sbr.rel (%p396) target = $region40
        $region39: #{tpu_custom_call.1} parent=27 // pred_region
          %s399 = smul.u32 2, %s25
          %s401 = ssub.s32 512, 512
          %402 = vsyncadd %s392, %s401
          %s403 = smul.addr %s24, 4
          %s404 = sadd.s32 %s399, %s403
          %s405 = smul.addr %s404, 128
          %s406 = scalar_lea.hbm %s2, %s405
          %s407 = sshll.u32 %s395, 4
          %s408 = int_to_ptr.vmem [resolvable:$true] %s407
          %413 = dma.vmem_to_hbm [thread:$0]  %s408, 512, %s406, %s392, 256, 256, 16
        $region40: #{tpu_custom_call.1} parent=27 // pred_fallthru
          _
      $region28: #{tpu_custom_call.1} parent=5 // pred_fallthru
        _
      %p414 = scmp.le.s32.totalorder 2, %s15
      // Predicated region
      $region41: #{tpu_custom_call.1} parent=5 // pred_check
        %p415 = pneg %p414
      $region42: #{tpu_custom_call.1} parent=5 // pred_check_branch
        %417 = sbr.rel (%p415) target = $region44
      $region43: #{tpu_custom_call.1} parent=5 // pred_region
        %s418 = ssub.s32 %s15, 2
        // Predicated region
        $region45: #{tpu_custom_call.1} parent=43 // pred_check
          %p419 = pneg %p112
        $region46: #{tpu_custom_call.1} parent=43 // pred_check_branch
          %421 = sbr.rel (%p419) target = $region48
        $region47: #{tpu_custom_call.1} parent=43 // pred_region
          %s422 = sand.u32 %s97, 1
          %s423 = scalar_lea.sflag [#allocation4], %s422
          %s424 = sand.u32 %s97, 1
          %s425 = smul.addr %s424, 32
          %s426 = scalar_lea.vmem [#allocation7], %s425
          %427 = dma.done %s423, 512
        $region48: #{tpu_custom_call.1} parent=43 // pred_fallthru
          _
      $region44: #{tpu_custom_call.1} parent=5 // pred_fallthru
        _
    $region6: #{tpu_custom_call.1} parent=1 // loop_footer
      %s19 = sadd.s32 1, %s15
    $region7: #{tpu_custom_call.1} parent=1 // loop_footer_branch
      %14 = sbr.rel target = $region3
    $region8: #{tpu_custom_call.1} parent=1 // loop_exit
      _
    %428 = vsyncpa [#allocation3], 1
    %s429 = scalar_lea.sflag [#allocation3], 1
    %430 = vsyncpa %s429, 1
    %431 = vsyncpa [#allocation6], 1
    %432 = vsyncpa [#allocation4], 1
    %s433 = scalar_lea.sflag [#allocation4], 1
    %434 = vsyncpa %s433, 1

</llo_original>
